<compile_context>
chip_gen: v7x
topology: tpu7x:2x2x1
jax: 0.10.0
libtpu: 0.0.40
codegen_flags: <defaults>
</compile_context>

<pallas_src>
import functools
import math

import jax
import jax.numpy as jnp
from jax import lax
from jax.experimental import pallas as pl
from jax.experimental.pallas import tpu as pltpu


def _round_up(x, m):
    return (x + m - 1) // m * m


def _balanced_dropout_kernel(n_cols, seed_ref, thr_ref, inv_ref, x_ref, out_ref):
    # seed_ref : SMEM scalar-prefetch, shape (1,) int32
    # thr_ref  : [tb, 1] uint32  per-row keep threshold (keep * 2^32)
    # inv_ref  : [tb, 1] float32 per-row 1/keep (0 when keep == 0)
    # x_ref / out_ref : [tb, tf] tile of the flattened input/output
    tb, tf = x_ref.shape
    i = pl.program_id(0)
    j = pl.program_id(1)

    # Unique per-element counter (flat index into the [R, n_cols] view) mixed
    # with the seed, then a splitmix32/lowbias32-style finalizer -> uniform u32.
    row = lax.broadcasted_iota(jnp.int32, (tb, tf), 0) + i * tb
    col = lax.broadcasted_iota(jnp.int32, (tb, tf), 1) + j * tf
    ctr = row * n_cols + col + seed_ref[0] * jnp.int32(-1640531527)  # wraps mod 2^32

    h = ctr.astype(jnp.uint32)
    h = h ^ (h >> 16)
    h = h * jnp.uint32(0x7FEB352D)
    h = h ^ (h >> 15)
    h = h * jnp.uint32(0x846CA68B)
    h = h ^ (h >> 16)

    keep_mask = h < thr_ref[...]                        # Bernoulli(keep) per element
    xv = x_ref[...].astype(jnp.float32)                 # upcast (v5e VPU has no bf16)
    out = jnp.where(keep_mask, xv * inv_ref[...], 0.0)  # inverted-dropout scaling
    out_ref[...] = out.astype(out_ref.dtype)


def _pick_tiles(R, C, itemsize, target_block_bytes=1 << 20, tb_cap=512):
    """Row tile tb (multiple of 8 dividing R, or R itself) and lane tile tf
    (multiple of 128 dividing C), sized so tb*tf*itemsize ~= 1 MiB per block."""
    if R % 8 == 0:
        tb = (min(R, tb_cap) // 8) * 8
        while R % tb != 0:
            tb -= 8
    else:
        tb = R  # full-extent row block (allowed); only for tiny odd batches
    n128 = C // 128
    cap = max(1, (target_block_bytes // (tb * itemsize)) // 128)
    d = min(n128, cap)
    while n128 % d != 0:
        d -= 1
    tf = d * 128
    return tb, tf


def balanced_dropout(x, y, drop_rates, *, seed=0, training=True):
    """JAX/Pallas equivalent of BalancedDropout.forward.

    x          : [B, C, H, W] (any floating dtype; bf16 stays bf16 end-to-end)
    y          : [B] int32 class labels (used only for per-class drop_rates)
    drop_rates : python float (PlainDropout) or [nClasses] array (MappedDropout)
    """
    if not training:
        return x

    orig_shape = x.shape
    B = orig_shape[0]
    io_dtype = x.dtype if jnp.issubdtype(x.dtype, jnp.floating) else jnp.float32
    x2 = x.reshape(B, -1).astype(io_dtype)
    F = x2.shape[1]

    # Per-row keep probability.
    if isinstance(drop_rates, (float, int)):
        keep = jnp.full((B,), 1.0 - float(drop_rates), dtype=jnp.float32)
    else:
        keep = (1.0 - jnp.asarray(drop_rates, dtype=jnp.float32))[y]
    keep = jnp.clip(keep, 0.0, 1.0)

    # Precompute integer Bernoulli threshold and reciprocal once per row:
    #   element kept  <=>  hash_u32 < thr,   thr = keep * 2^32 (clamped).
    # keep == 0 -> thr = 0 and inv = 0  => exact zeros, no NaN (torch p=1 case).
    thr = jnp.where(keep >= 1.0, jnp.uint32(0xFFFFFFFF),
                    (keep * 4294967296.0).astype(jnp.uint32))
    inv = jnp.where(keep > 0.0, 1.0 / keep, 0.0).astype(jnp.float32)

    # Lane-dense layout: pad feature dim to a multiple of 128 (unmasked vst).
    F_pad = _round_up(F, 128)
    if F_pad != F:
        x2 = jnp.pad(x2, ((0, 0), (0, F_pad - F)))

    # Sublane occupancy: if B is not a multiple of 8, fold feature chunks into
    # the row dimension (free row-major reshape) so row tiles can be x8 wide.
    g = 1
    if B % 8 != 0:
        need = 8 // math.gcd(B, 8)
        if (F_pad // 128) % need == 0:
            g = need
    R, Cv = B * g, F_pad // g
    xv = x2.reshape(R, Cv)
    thr_r = jnp.repeat(thr, g).reshape(R, 1)
    inv_r = jnp.repeat(inv, g).reshape(R, 1)

    itemsize = jnp.dtype(io_dtype).itemsize
    tb, tf = _pick_tiles(R, Cv, itemsize)
    grid = (R // tb, Cv // tf)

    seed_arr = jnp.array([seed], dtype=jnp.int32)
    kernel = functools.partial(_balanced_dropout_kernel, Cv)

    out = pl.pallas_call(
        kernel,
        out_shape=jax.ShapeDtypeStruct((R, Cv), io_dtype),
        grid_spec=pltpu.PrefetchScalarGridSpec(
            num_scalar_prefetch=1,
            grid=grid,
            in_specs=[
                pl.BlockSpec((tb, 1), lambda i, j, seed: (i, 0)),   # thr per row
                pl.BlockSpec((tb, 1), lambda i, j, seed: (i, 0)),   # 1/keep per row
                pl.BlockSpec((tb, tf), lambda i, j, seed: (i, j)),  # x tile
            ],
            out_specs=pl.BlockSpec((tb, tf), lambda i, j, seed: (i, j)),
        ),
        compiler_params=pltpu.CompilerParams(
            dimension_semantics=("parallel", "parallel"),
            vmem_limit_bytes=32 * 1024 * 1024,
        ),
    )(seed_arr, thr_r, inv_r, xv)

    out = out.reshape(B, F_pad)
    if F_pad != F:
        out = out[:, :F]
    return out.reshape(orig_shape)


if __name__ == "__main__":
    key = jax.random.PRNGKey(0)
    kx, ky = jax.random.split(key)

    B, C, H, W = 2, 4, 16, 16
    n_classes = 3

    x = jax.random.normal(kx, (B, C, H, W), dtype=jnp.float32)
    y = jax.random.randint(ky, (B,), 0, n_classes, dtype=jnp.int32)

    # Per-class drop rates (MappedDropout branch).
    drop_rates = jnp.array([0.2, 0.5, 0.7], dtype=jnp.float32)

    # --- MappedDropout path (per-class rates) ---
    out_mapped = jax.block_until_ready(
        balanced_dropout(x, y, drop_rates, seed=42, training=True))
    keep_rows = (1.0 - drop_rates)[y].reshape(B, 1, 1, 1)
    scaled = x / keep_rows
    is_zero = jnp.abs(out_mapped) < 1e-6
    is_scaled = jnp.abs(out_mapped - scaled) < 1e-4 * (1.0 + jnp.abs(scaled))
    assert bool(jnp.all(is_zero | is_scaled)), "dropout semantics violated"
    assert bool(jnp.any(is_zero)) and bool(jnp.any(~is_zero)), "degenerate mask"

    # --- PlainDropout path (float rate) ---
    out_plain = jax.block_until_ready(
        balanced_dropout(x, y, 0.5, seed=7, training=True))
    scaled_p = x / 0.5
    is_zero_p = jnp.abs(out_plain) < 1e-6
    is_scaled_p = jnp.abs(out_plain - scaled_p) < 1e-4 * (1.0 + jnp.abs(scaled_p))
    assert bool(jnp.all(is_zero_p | is_scaled_p)), "plain dropout semantics violated"

    # --- native bf16 I/O path ---
    out_bf = jax.block_until_ready(
        balanced_dropout(x.astype(jnp.bfloat16), y, drop_rates, seed=3, training=True))
    assert out_bf.dtype == jnp.bfloat16

    # --- eval mode: identity ---
    out_eval = balanced_dropout(x, y, drop_rates, training=False)
    assert bool(jnp.all(out_eval == x))

    print("KERNEL_OK")
</pallas_src>

<mosaic_0001>
module attributes {stable_mosaic.version = 11 : i64} {
  func.func @_balanced_dropout_kernel(%arg0: i32, %arg1: i32, %arg2: memref<1xi32, #tpu.memory_space<smem>>, %arg3: memref<8x1xi32, #tpu.memory_space<vmem>>, %arg4: memref<8x1xf32, #tpu.memory_space<vmem>>, %arg5: memref<8x256xf32, #tpu.memory_space<vmem>>, %arg6: memref<8x256xf32, #tpu.memory_space<vmem>>) attributes {dimension_semantics = [#tpu.dimension_semantics<parallel>, #tpu.dimension_semantics<parallel>], iteration_bounds = array<i64: 1, 1>, scalar_prefetch = 1 : i64, scratch_operands = 0 : i64, tpu.core_type = #tpu.core_type<tc>, window_params = [{transform_indices = @transform_0, window_bounds = array<i64: 8, 1>}, {transform_indices = @transform_1, window_bounds = array<i64: 8, 1>}, {transform_indices = @transform_2, window_bounds = array<i64: 8, 256>}, {transform_indices = @transform_3, window_bounds = array<i64: 8, 256>}]} {
    %0 = tpu.iota {dimensions = array<i32: 0>} : vector<8x256xi32>
    %c8_i32 = arith.constant 8 : i32
    %1 = arith.muli %arg0, %c8_i32 : i32
    %2 = vector.broadcast %1 : i32 to vector<8x256xi32>
    %3 = arith.addi %0, %2 : vector<8x256xi32>
    %4 = tpu.iota {dimensions = array<i32: 1>} : vector<8x256xi32>
    %c256_i32 = arith.constant 256 : i32
    %5 = arith.muli %arg1, %c256_i32 : i32
    %6 = vector.broadcast %5 : i32 to vector<8x256xi32>
    %7 = arith.addi %4, %6 : vector<8x256xi32>
    %c256_i32_0 = arith.constant 256 : i32
    %8 = vector.broadcast %c256_i32_0 : i32 to vector<8x256xi32>
    %9 = arith.muli %3, %8 : vector<8x256xi32>
    %10 = arith.addi %9, %7 : vector<8x256xi32>
    %c0 = arith.constant 0 : index
    %11 = memref.load %arg2[%c0] : memref<1xi32, #tpu.memory_space<smem>>
    %c-1640531527_i32 = arith.constant -1640531527 : i32
    %12 = arith.muli %11, %c-1640531527_i32 : i32
    %13 = vector.broadcast %12 : i32 to vector<8x256xi32>
    %14 = arith.addi %10, %13 : vector<8x256xi32>
    %c16_i32 = arith.constant 16 : i32
    %15 = vector.broadcast %c16_i32 : i32 to vector<8x256xi32>
    %16 = arith.shrui %14, %15 : vector<8x256xi32>
    %17 = arith.xori %14, %16 : vector<8x256xi32>
    %c2146121005_i32 = arith.constant 2146121005 : i32
    %18 = vector.broadcast %c2146121005_i32 : i32 to vector<8x256xi32>
    %19 = arith.muli %17, %18 : vector<8x256xi32>
    %c15_i32 = arith.constant 15 : i32
    %20 = vector.broadcast %c15_i32 : i32 to vector<8x256xi32>
    %21 = arith.shrui %19, %20 : vector<8x256xi32>
    %22 = arith.xori %19, %21 : vector<8x256xi32>
    %c-2073254261_i32 = arith.constant -2073254261 : i32
    %23 = vector.broadcast %c-2073254261_i32 : i32 to vector<8x256xi32>
    %24 = arith.muli %22, %23 : vector<8x256xi32>
    %c16_i32_1 = arith.constant 16 : i32
    %25 = vector.broadcast %c16_i32_1 : i32 to vector<8x256xi32>
    %26 = arith.shrui %24, %25 : vector<8x256xi32>
    %27 = arith.xori %24, %26 : vector<8x256xi32>
    %c0_2 = arith.constant 0 : index
    %c0_3 = arith.constant 0 : index
    %28 = vector.load %arg3[%c0_2, %c0_3] : memref<8x1xi32, #tpu.memory_space<vmem>>, vector<8x1xi32>
    %29 = vector.broadcast %28 : vector<8x1xi32> to vector<8x256xi32>
    %30 = arith.cmpi ult, %27, %29 : vector<8x256xi32>
    %c0_4 = arith.constant 0 : index
    %c0_5 = arith.constant 0 : index
    %31 = vector.load %arg5[%c0_4, %c0_5] : memref<8x256xf32, #tpu.memory_space<vmem>>, vector<8x256xf32>
    %c0_6 = arith.constant 0 : index
    %c0_7 = arith.constant 0 : index
    %32 = vector.load %arg4[%c0_6, %c0_7] : memref<8x1xf32, #tpu.memory_space<vmem>>, vector<8x1xf32>
    %33 = vector.broadcast %32 : vector<8x1xf32> to vector<8x256xf32>
    %34 = arith.mulf %31, %33 : vector<8x256xf32>
    %cst = arith.constant 0.000000e+00 : f32
    %35 = vector.broadcast %cst : f32 to vector<8x256xf32>
    %36 = arith.select %30, %34, %35 : vector<8x256xi1>, vector<8x256xf32>
    %c0_8 = arith.constant 0 : index
    %c0_9 = arith.constant 0 : index
    %37 = vector.load %arg6[%c0_8, %c0_9] : memref<8x256xf32, #tpu.memory_space<vmem>>, vector<8x256xf32>
    tpu.vector_store %arg6[%c0_8, %c0_9], %36 {strides = array<i32>} : memref<8x256xf32, #tpu.memory_space<vmem>>, vector<8x256xf32>,
    return
  }
  func.func @transform_0(%arg0: i32, %arg1: i32, %arg2: memref<1xi32, #tpu.memory_space<smem>>) -> (i32, i32) {
    %c0_i32 = arith.constant 0 : i32
    %c0_i32_0 = arith.constant 0 : i32
    return %arg0, %c0_i32 : i32, i32
  }
  func.func @transform_1(%arg0: i32, %arg1: i32, %arg2: memref<1xi32, #tpu.memory_space<smem>>) -> (i32, i32) {
    %c0_i32 = arith.constant 0 : i32
    %c0_i32_0 = arith.constant 0 : i32
    return %arg0, %c0_i32 : i32, i32
  }
  func.func @transform_2(%arg0: i32, %arg1: i32, %arg2: memref<1xi32, #tpu.memory_space<smem>>) -> (i32, i32) {
    %c0_i32 = arith.constant 0 : i32
    return %arg0, %arg1 : i32, i32
  }
  func.func @transform_3(%arg0: i32, %arg1: i32, %arg2: memref<1xi32, #tpu.memory_space<smem>>) -> (i32, i32) {
    %c0_i32 = arith.constant 0 : i32
    return %arg0, %arg1 : i32, i32
  }
}

</mosaic_0001>

<llo_original>
// kernel: tpu_custom_call.1
$region0: #{tpu_custom_call.1}
  #allocation0 [shape = 'u32[]', space=smem, size = 0x4, offset = 0x4, fixed_abs, tag = 'smem constant byte address 0x4 - core index']
  #allocation1 [shape = 'u32[144,128]{1,0:T(1,128)}', space=vmem, size = 0x12000, scoped, tag = 'internal scratch']
  #allocation2 [shape = 's32[1]{0}', space=sflag, size = 0x4, scoped, tag = 'scoped memory for tpu_custom_call.1']
  #allocation3 [shape = 's32[1]{0:T(128)S(6)}', space=smem, size = 0x200, scoped, tag = 'prefetched SMEM operand 0']
  %s0 = inlined_call_operand.<no memory space> [shape: s32[1], index: 0, kind: input, shape index: {}]
  %s1 = inlined_call_operand.vmem [shape: u32[8,1], index: 1, kind: input, shape index: {}]
  %s2 = inlined_call_operand.vmem [shape: f32[8,1], index: 2, kind: input, shape index: {}]
  %s3 = inlined_call_operand.vmem [shape: f32[8,256], index: 3, kind: input, shape index: {}]
  %s4 = inlined_call_operand.hbm [shape: f32[8,256], index: 4, kind: output, shape index: {}]
  %s5 = sld [smem:[#allocation0]]
  $region22: #{tpu_custom_call.1} parent=0
    _
  %s7 = ssub.s32 1, %s5
  %s8 = scalar_select 0, %s7, %s5
  %9 = sst [smem:[#allocation3]] %s0
  $region1: #{tpu_custom_call.1} parent=0
    #allocation4 [shape = 'u8[8192]{0}', space=vmem, size = 0x2000, scoped, tag = 'output window, operand 0, single buffered']
    #allocation5 [shape = 's32[1]{0}', space=sflag, size = 0x4, scoped, tag = 'scoped memory for tpu_custom_call.1']
    %10 = vsyncpa [#allocation5], 0
    // Predicated region
    $region2: #{tpu_custom_call.1} parent=1 // pred_check
      _
    $region3: #{tpu_custom_call.1} parent=1 // pred_check_branch
      %12 = sbr.rel (0) target = $region5
    $region4: #{tpu_custom_call.1} parent=1 // pred_region
      _
    $region5: #{tpu_custom_call.1} parent=1 // pred_fallthru
      _
    // Predicated region
    $region6: #{tpu_custom_call.1} parent=1 // pred_check
      _
    $region7: #{tpu_custom_call.1} parent=1 // pred_check_branch
      %14 = sbr.rel (0) target = $region9
    $region8: #{tpu_custom_call.1} parent=1 // pred_region
      _
    $region9: #{tpu_custom_call.1} parent=1 // pred_fallthru
      _
    // Predicated region
    $region10: #{tpu_custom_call.1} parent=1 // pred_check
      _
    $region11: #{tpu_custom_call.1} parent=1 // pred_check_branch
      %16 = sbr.rel (0) target = $region13
    $region12: #{tpu_custom_call.1} parent=1 // pred_region
      _
    $region13: #{tpu_custom_call.1} parent=1 // pred_fallthru
      _
    %v17 = vlaneseq
    %v18 = vshrl.u32 %v17, 7
    %s19 = smul.u32 0, 8
    %v20 = vstv %s19
    %v21 = vadd.s32 %v18, %v20
    %v22 = vlaneseq
    %v23 = vand.u32 %v22, 127
    %v24 = vadd.s32 %v23, 128
    %s25 = smul.u32 0, 256
    %v26 = vstv %s25
    %v27 = vadd.s32 %v23, %v26
    %v28 = vadd.s32 %v24, %v26
    %v29 = vmul.u32 %v21, 256
    %v30 = vadd.s32 %v29, %v27
    %v31 = vadd.s32 %v29, %v28
    %s32 = sld [smem:[#allocation3]]
    %s33 = smul.u32 %s32, 2654435769
    %v34 = vstv %s33
    %v35 = vadd.s32 %v30, %v34
    %v36 = vadd.s32 %v31, %v34
    %v37 = vshrl.u32 %v35, 16
    %v38 = vshrl.u32 %v36, 16
    %v39 = vxor.u32 %v35, %v37
    %v40 = vxor.u32 %v36, %v38
    %v41 = vmul.u32 %v39, 2146121005
    %v42 = vmul.u32 %v40, 2146121005
    %v43 = vshrl.u32 %v41, 15
    %v44 = vshrl.u32 %v42, 15
    %v45 = vxor.u32 %v41, %v43
    %v46 = vxor.u32 %v42, %v44
    %v47 = vmul.u32 %v45, 2221713035
    %v48 = vmul.u32 %v46, 2221713035
    %v49 = vshrl.u32 %v47, 16
    %v50 = vshrl.u32 %v48, 16
    %v51 = vxor.u32 %v47, %v49
    %v52 = vxor.u32 %v48, %v50
    %v53 = vld [vmem:[%s1] sm:$0xff]
    %54 = vset.pattern.permute.xlu0 0
    %55 = vperm.xlu0 %54, %v53
    %v56 = vpop.permute.xlu0 %55
    %vm57 = vcmp.lt.u32.totalorder %v51, %v56
    %vm58 = vcmp.lt.u32.totalorder %v52, %v56
    %v59 = vld [vmem:[%s3] sm:$0xff]
    %v60 = vld [vmem:[%s3 + $0x8] sm:$0xff]
    %v61 = vld [vmem:[%s2] sm:$0xff]
    %63 = vset.pattern.permute.xlu0 0
    %64 = vperm.xlu0 %63, %v61
    %v65 = vpop.permute.xlu0 %64
    %v67 = vmul.f32 %v59, %v65
    %v68 = vmul.f32 %v60, %v65
    %v69 = vsel %vm57, %v67, 0.0
    %v70 = vsel %vm58, %v68, 0.0
    %71 = vst [vmem:[#allocation4] sm:$0xff] %v69
    %72 = vst [vmem:[#allocation4 + $0x8] sm:$0xff] %v70
    // Predicated region
    $region14: #{tpu_custom_call.1} parent=1 // pred_check
      _
    $region15: #{tpu_custom_call.1} parent=1 // pred_check_branch
      %74 = sbr.rel (0) target = $region17
    $region16: #{tpu_custom_call.1} parent=1 // pred_region
      %s76 = ssub.s32 256, 256
      %77 = vsyncadd [#allocation5], %s76
      %s79 = sshll.u32 [#allocation4], 4
      %s80 = int_to_ptr.vmem [resolvable:$true] %s79
      %82 = dma.vmem_to_hbm [thread:$0]  %s80, 256, %s4, [#allocation5]
    $region17: #{tpu_custom_call.1} parent=1 // pred_fallthru
      _
    // Predicated region
    $region18: #{tpu_custom_call.1} parent=1 // pred_check
      _
    $region19: #{tpu_custom_call.1} parent=1 // pred_check_branch
      %84 = sbr.rel (0) target = $region21
    $region20: #{tpu_custom_call.1} parent=1 // pred_region
      %85 = dma.done [#allocation5], 256
    $region21: #{tpu_custom_call.1} parent=1 // pred_fallthru
      _
    %86 = vsyncpa [#allocation5], 1

</llo_original>
